<compile_context>
chip_gen: v5e
topology: v5e:2x2
jax: 0.10.0
libtpu: 0.0.40
codegen_flags: <defaults>
</compile_context>

<pallas_src>
import numpy as np
import jax
import jax.numpy as jnp
from jax import lax
from jax.experimental import pallas as pl
from jax.experimental.pallas import tpu as pltpu

BETA = 0.1
NUM_LAYERS = 5


def _round_up(x, m):
    return (x + m - 1) // m * m


def _make_kernel(beta):
    def kernel(yfr_ref, yfi_ref, g_ref, rho_ref, or_ref, oi_ref, ur_ref, ui_ref):
        l = pl.program_id(1)
        num_layers = pl.num_programs(1)
        TB, N = or_ref.shape

        @pl.when(l == 0)
        def _():
            ur_ref[...] = jnp.zeros_like(ur_ref)
            ui_ref[...] = jnp.zeros_like(ui_ref)

        def soft(re, im):
            # S(x) = x * max(1 - beta/|x|, 0); rsqrt runs on the EUP slot.
            mag2 = jnp.maximum(re * re + im * im, 1e-30)
            scale = jnp.maximum(1.0 - beta * lax.rsqrt(mag2), 0.0)
            return re * scale, im * scale

        ur = ur_ref[...]
        ui = ui_ref[...]
        sr, si = soft(ur, ui)

        rho = rho_ref[l]                                   # (1, 1) broadcast
        tr = rho * (2.0 * sr - ur) + yfr_ref[...]
        ti = rho * (2.0 * si - ui) + yfi_ref[...]

        g = g_ref[0]                                       # (N, 2N) = [G_re | G_im]
        pr = jnp.dot(tr.astype(g.dtype), g,
                     preferred_element_type=jnp.float32)   # [tr@Gr | tr@Gi]
        pi = jnp.dot(ti.astype(g.dtype), g,
                     preferred_element_type=jnp.float32)   # [ti@Gr | ti@Gi]
        vr = pr[:, :N] - pi[:, N:]
        vi = pr[:, N:] + pi[:, :N]

        unr = vr + ur - sr
        uni = vi + ui - si
        ur_ref[...] = unr
        ui_ref[...] = uni

        @pl.when(l == num_layers - 1)
        def _():
            fr, fi = soft(unr, uni)
            or_ref[...] = fr
            oi_ref[...] = fi

    return kernel


def cadmm_net(y, A, v, rho_all, beta=BETA, num_layers=NUM_LAYERS,
              dft_dtype=jnp.float32):
    """y: (M, B) complex, A: (M, N) complex, v: (N,) f32, rho_all: (L,) f32."""
    M, B = y.shape
    N = A.shape[1]
    L = num_layers

    # --- host / XLA-side prep ------------------------------------------------
    # yf = A^H @ y once, outside the kernel (A never enters kernel VMEM).
    yf = jnp.matmul(jnp.conj(A).T.astype(jnp.complex64), y.astype(jnp.complex64))
    yf_t = yf.T                                                  # (B, N)

    TB = min(256, _round_up(B, 8))
    Bp = _round_up(B, TB)
    pad = Bp - B
    yfr = jnp.real(yf_t).astype(jnp.float32)
    yfi = jnp.imag(yf_t).astype(jnp.float32)
    if pad:
        yfr = jnp.pad(yfr, ((0, pad), (0, 0)))
        yfi = jnp.pad(yfi, ((0, pad), (0, 0)))

    # Per-layer fused circulant operator (float64 on host):
    #   row layout:  u_out = t @ G_l + u - S(u),  G_l = F diag(1/(v+rho_l)) conj(F) / N
    v_np = np.asarray(v, dtype=np.float64)
    rho_np = np.asarray(rho_all, dtype=np.float64)[:L]
    n = np.arange(N)
    F = np.exp(-2j * np.pi * np.outer(n, n) / N)                 # (N, N) complex128
    Fc = np.conj(F)
    g_cat = np.empty((L, N, 2 * N), dtype=np.float64)
    for l in range(L):
        w_l = 1.0 / (v_np + rho_np[l])                           # (N,)
        G_l = (F * w_l[None, :]) @ Fc / N                        # (N, N) complex128
        g_cat[l, :, :N] = G_l.real
        g_cat[l, :, N:] = G_l.imag
    g_cat = jnp.asarray(g_cat, dtype=dft_dtype)                  # (L, N, 2N)
    rho_v = jnp.asarray(rho_np, dtype=jnp.float32)[:, None, None]  # (L, 1, 1)

    # --- VMEM budget ----------------------------------------------------------
    num_tiles = Bp // TB
    itemsize = jnp.dtype(dft_dtype).itemsize
    tile_b = TB * N * 4
    resident = (2 * N * 2 * N * itemsize      # streamed G_l (double-buffered)
                + 2 * L * 4                   # rho (resident)
                + (2 * 2 + 2 * 2) * tile_b    # yf tiles + out tiles (double-buffered)
                + 2 * tile_b                  # u scratch
                + 8 * tile_b)                 # live intermediates (pr/pi/...)
    vmem_limit = int(min(max(2 * resident, 32 * 1024 * 1024), 64 * 1024 * 1024))

    kernel = _make_kernel(beta)
    out_re, out_im = pl.pallas_call(
        kernel,
        grid=(num_tiles, L),
        in_specs=[
            pl.BlockSpec((TB, N), lambda b, l: (b, 0)),            # yf_re (resident over l)
            pl.BlockSpec((TB, N), lambda b, l: (b, 0)),            # yf_im
            pl.BlockSpec((1, N, 2 * N), lambda b, l: (l, 0, 0)),   # G_l streamed per layer
            pl.BlockSpec((L, 1, 1), lambda b, l: (0, 0, 0)),       # rho (VMEM resident)
        ],
        out_specs=(
            pl.BlockSpec((TB, N), lambda b, l: (b, 0)),
            pl.BlockSpec((TB, N), lambda b, l: (b, 0)),
        ),
        out_shape=(jax.ShapeDtypeStruct((Bp, N), jnp.float32),
                   jax.ShapeDtypeStruct((Bp, N), jnp.float32)),
        scratch_shapes=[pltpu.VMEM((TB, N), jnp.float32),          # u real
                        pltpu.VMEM((TB, N), jnp.float32)],         # u imag
        compiler_params=pltpu.CompilerParams(
            dimension_semantics=("parallel", "arbitrary"),
            vmem_limit_bytes=vmem_limit),
    )(yfr, yfi, g_cat, rho_v)

    out = (out_re[:B] + 1j * out_im[:B]).T                         # (N, B) complex
    return out


def reference_numpy(y, A, v, rho_all, beta, num_layers):
    y = np.asarray(y).astype(np.complex128)
    A = np.asarray(A).astype(np.complex128)
    v = np.asarray(v).astype(np.float64)
    rho_all = np.asarray(rho_all).astype(np.float64)

    def S(x):
        mag = np.abs(x)
        scale = np.where(mag > beta, (mag - beta) / np.maximum(mag, 1e-30), 0.0)
        return x * scale

    N = A.shape[1]
    yf = A.conj().T @ y
    u = np.zeros((N, y.shape[1]), dtype=np.complex128)
    for l in range(num_layers):
        rho = rho_all[l]
        Su = S(u)
        w = (1.0 / (v + rho))[:, None]
        u_out = np.fft.ifft(w * np.fft.fft(rho * (2.0 * Su - u) + yf, axis=0), axis=0)
        u = u_out + u - Su
    return S(u)


if __name__ == "__main__":
    M, N, B = 16, 16, 8

    key = jax.random.PRNGKey(0)
    k1, k2, k3, k4, k5 = jax.random.split(key, 5)

    A = (jax.random.normal(k1, (M, N), dtype=jnp.float32)
         + 1j * jax.random.normal(k2, (M, N), dtype=jnp.float32)) / np.sqrt(M)
    y = (jax.random.normal(k3, (M, B), dtype=jnp.float32)
         + 1j * jax.random.normal(k4, (M, B), dtype=jnp.float32))
    v = jnp.abs(jax.random.normal(k5, (N,), dtype=jnp.float32)) + 0.5
    rho_all = jnp.ones((NUM_LAYERS,), dtype=jnp.float32)

    out = jax.block_until_ready(cadmm_net(y, A, v, rho_all))

    ref = reference_numpy(y, A, v, rho_all, BETA, NUM_LAYERS)
    np.testing.assert_allclose(np.asarray(out), ref, rtol=2e-3, atol=2e-3)

    print("KERNEL_OK")
</pallas_src>

<mosaic_0001>
module attributes {stable_mosaic.version = 11 : i64} {
  func.func @kernel(%arg0: i32, %arg1: i32, %arg2: memref<8x16xf32, #tpu.memory_space<vmem>>, %arg3: memref<8x16xf32, #tpu.memory_space<vmem>>, %arg4: memref<1x16x32xf32, #tpu.memory_space<vmem>>, %arg5: memref<5x1x1xf32, #tpu.memory_space<vmem>>, %arg6: memref<8x16xf32, #tpu.memory_space<vmem>>, %arg7: memref<8x16xf32, #tpu.memory_space<vmem>>, %arg8: memref<8x16xf32, #tpu.memory_space<vmem>>, %arg9: memref<8x16xf32, #tpu.memory_space<vmem>>) attributes {dimension_semantics = [#tpu.dimension_semantics<parallel>, #tpu.dimension_semantics<arbitrary>], iteration_bounds = array<i64: 1, 5>, scalar_prefetch = 0 : i64, scratch_operands = 2 : i64, tpu.core_type = #tpu.core_type<tc>, window_params = [{transform_indices = @transform_0, window_bounds = array<i64: 8, 16>}, {transform_indices = @transform_1, window_bounds = array<i64: 8, 16>}, {transform_indices = @transform_2, window_bounds = array<i64: 1, 16, 32>}, {pipeline_mode = #tpu.pipeline_mode<synchronous>, transform_indices = @transform_3, window_bounds = array<i64: 5, 1, 1>}, {transform_indices = @transform_4, window_bounds = array<i64: 8, 16>}, {transform_indices = @transform_5, window_bounds = array<i64: 8, 16>}]} {
    %c0_i32 = arith.constant 0 : i32
    %0 = arith.cmpi eq, %arg1, %c0_i32 : i32
    %1 = arith.extui %0 : i1 to i32
    %c0_i32_0 = arith.constant 0 : i32
    %2 = arith.cmpi ne, %1, %c0_i32_0 : i32
    scf.if %2 {
      %cst_25 = arith.constant 0.000000e+00 : f32
      %55 = vector.broadcast %cst_25 : f32 to vector<8x16xf32>
      %c0_26 = arith.constant 0 : index
      %c0_27 = arith.constant 0 : index
      %56 = vector.load %arg8[%c0_26, %c0_27] : memref<8x16xf32, #tpu.memory_space<vmem>>, vector<8x16xf32>
      tpu.vector_store %arg8[%c0_26, %c0_27], %55 {strides = array<i32>} : memref<8x16xf32, #tpu.memory_space<vmem>>, vector<8x16xf32>,
      %cst_28 = arith.constant 0.000000e+00 : f32
      %57 = vector.broadcast %cst_28 : f32 to vector<8x16xf32>
      %c0_29 = arith.constant 0 : index
      %c0_30 = arith.constant 0 : index
      %58 = vector.load %arg9[%c0_29, %c0_30] : memref<8x16xf32, #tpu.memory_space<vmem>>, vector<8x16xf32>
      tpu.vector_store %arg9[%c0_29, %c0_30], %57 {strides = array<i32>} : memref<8x16xf32, #tpu.memory_space<vmem>>, vector<8x16xf32>,
    } else {
    }
    %c0 = arith.constant 0 : index
    %c0_1 = arith.constant 0 : index
    %3 = vector.load %arg8[%c0, %c0_1] : memref<8x16xf32, #tpu.memory_space<vmem>>, vector<8x16xf32>
    %c0_2 = arith.constant 0 : index
    %c0_3 = arith.constant 0 : index
    %4 = vector.load %arg9[%c0_2, %c0_3] : memref<8x16xf32, #tpu.memory_space<vmem>>, vector<8x16xf32>
    %5 = arith.mulf %3, %3 : vector<8x16xf32>
    %6 = arith.mulf %4, %4 : vector<8x16xf32>
    %7 = arith.addf %5, %6 : vector<8x16xf32>
    %cst = arith.constant 1.000000e-30 : f32
    %8 = vector.broadcast %cst : f32 to vector<8x16xf32>
    %9 = arith.maximumf %7, %8 : vector<8x16xf32>
    %10 = math.rsqrt %9 : vector<8x16xf32>
    %cst_4 = arith.constant 1.000000e-01 : f32
    %11 = vector.broadcast %cst_4 : f32 to vector<8x16xf32>
    %12 = arith.mulf %11, %10 : vector<8x16xf32>
    %cst_5 = arith.constant 1.000000e+00 : f32
    %13 = vector.broadcast %cst_5 : f32 to vector<8x16xf32>
    %14 = arith.subf %13, %12 : vector<8x16xf32>
    %cst_6 = arith.constant 0.000000e+00 : f32
    %15 = vector.broadcast %cst_6 : f32 to vector<8x16xf32>
    %16 = arith.maximumf %14, %15 : vector<8x16xf32>
    %17 = arith.mulf %3, %16 : vector<8x16xf32>
    %18 = arith.mulf %4, %16 : vector<8x16xf32>
    %19 = arith.index_cast %arg1 : i32 to index
    %c0_7 = arith.constant 0 : index
    %c0_8 = arith.constant 0 : index
    %20 = vector.load %arg5[%19, %c0_7, %c0_8] : memref<5x1x1xf32, #tpu.memory_space<vmem>>, vector<1x1x1xf32>
    %21 = vector.shape_cast %20 : vector<1x1x1xf32> to vector<1x1xf32>
    %cst_9 = arith.constant 2.000000e+00 : f32
    %22 = vector.broadcast %cst_9 : f32 to vector<8x16xf32>
    %23 = arith.mulf %22, %17 : vector<8x16xf32>
    %24 = arith.subf %23, %3 : vector<8x16xf32>
    %25 = vector.broadcast %21 : vector<1x1xf32> to vector<8x16xf32>
    %26 = arith.mulf %25, %24 : vector<8x16xf32>
    %c0_10 = arith.constant 0 : index
    %c0_11 = arith.constant 0 : index
    %27 = vector.load %arg2[%c0_10, %c0_11] : memref<8x16xf32, #tpu.memory_space<vmem>>, vector<8x16xf32>
    %28 = arith.addf %26, %27 : vector<8x16xf32>
    %cst_12 = arith.constant 2.000000e+00 : f32
    %29 = vector.broadcast %cst_12 : f32 to vector<8x16xf32>
    %30 = arith.mulf %29, %18 : vector<8x16xf32>
    %31 = arith.subf %30, %4 : vector<8x16xf32>
    %32 = vector.broadcast %21 : vector<1x1xf32> to vector<8x16xf32>
    %33 = arith.mulf %32, %31 : vector<8x16xf32>
    %c0_13 = arith.constant 0 : index
    %c0_14 = arith.constant 0 : index
    %34 = vector.load %arg3[%c0_13, %c0_14] : memref<8x16xf32, #tpu.memory_space<vmem>>, vector<8x16xf32>
    %35 = arith.addf %33, %34 : vector<8x16xf32>
    %c0_15 = arith.constant 0 : index
    %c0_16 = arith.constant 0 : index
    %c0_17 = arith.constant 0 : index
    %36 = vector.load %arg4[%c0_15, %c0_16, %c0_17] : memref<1x16x32xf32, #tpu.memory_space<vmem>>, vector<1x16x32xf32>
    %37 = vector.shape_cast %36 : vector<1x16x32xf32> to vector<16x32xf32>
    %cst_18 = arith.constant dense<0.000000e+00> : vector<8x32xf32>
    %38 = tpu.matmul %28, %37, %cst_18 {dimension_numbers = #tpu.dot_dimension_numbers<[1], [0], [0], [1], [0, 0, 1, 1], [], []>} : vector<8x16xf32>, vector<16x32xf32>, vector<8x32xf32> -> vector<8x32xf32>
    %cst_19 = arith.constant dense<0.000000e+00> : vector<8x32xf32>
    %39 = tpu.matmul %35, %37, %cst_19 {dimension_numbers = #tpu.dot_dimension_numbers<[1], [0], [0], [1], [0, 0, 1, 1], [], []>} : vector<8x16xf32>, vector<16x32xf32>, vector<8x32xf32> -> vector<8x32xf32>
    %40 = vector.extract_strided_slice %38 {offsets = [0, 0], sizes = [8, 16], strides = [1, 1]} : vector<8x32xf32> to vector<8x16xf32>
    %41 = vector.extract_strided_slice %39 {offsets = [0, 16], sizes = [8, 16], strides = [1, 1]} : vector<8x32xf32> to vector<8x16xf32>
    %42 = arith.subf %40, %41 : vector<8x16xf32>
    %43 = vector.extract_strided_slice %38 {offsets = [0, 16], sizes = [8, 16], strides = [1, 1]} : vector<8x32xf32> to vector<8x16xf32>
    %44 = vector.extract_strided_slice %39 {offsets = [0, 0], sizes = [8, 16], strides = [1, 1]} : vector<8x32xf32> to vector<8x16xf32>
    %45 = arith.addf %43, %44 : vector<8x16xf32>
    %46 = arith.addf %42, %3 : vector<8x16xf32>
    %47 = arith.subf %46, %17 : vector<8x16xf32>
    %48 = arith.addf %45, %4 : vector<8x16xf32>
    %49 = arith.subf %48, %18 : vector<8x16xf32>
    %c0_20 = arith.constant 0 : index
    %c0_21 = arith.constant 0 : index
    %50 = vector.load %arg8[%c0_20, %c0_21] : memref<8x16xf32, #tpu.memory_space<vmem>>, vector<8x16xf32>
    tpu.vector_store %arg8[%c0_20, %c0_21], %47 {strides = array<i32>} : memref<8x16xf32, #tpu.memory_space<vmem>>, vector<8x16xf32>,
    %c0_22 = arith.constant 0 : index
    %c0_23 = arith.constant 0 : index
    %51 = vector.load %arg9[%c0_22, %c0_23] : memref<8x16xf32, #tpu.memory_space<vmem>>, vector<8x16xf32>
    tpu.vector_store %arg9[%c0_22, %c0_23], %49 {strides = array<i32>} : memref<8x16xf32, #tpu.memory_space<vmem>>, vector<8x16xf32>,
    %c4_i32 = arith.constant 4 : i32
    %52 = arith.cmpi eq, %arg1, %c4_i32 : i32
    %53 = arith.extui %52 : i1 to i32
    %c0_i32_24 = arith.constant 0 : i32
    %54 = arith.cmpi ne, %53, %c0_i32_24 : i32
    scf.if %54 {
      %55 = arith.mulf %47, %47 : vector<8x16xf32>
      %56 = arith.mulf %49, %49 : vector<8x16xf32>
      %57 = arith.addf %55, %56 : vector<8x16xf32>
      %cst_25 = arith.constant 1.000000e-30 : f32
      %58 = vector.broadcast %cst_25 : f32 to vector<8x16xf32>
      %59 = arith.maximumf %57, %58 : vector<8x16xf32>
      %60 = math.rsqrt %59 : vector<8x16xf32>
      %cst_26 = arith.constant 1.000000e-01 : f32
      %61 = vector.broadcast %cst_26 : f32 to vector<8x16xf32>
      %62 = arith.mulf %61, %60 : vector<8x16xf32>
      %cst_27 = arith.constant 1.000000e+00 : f32
      %63 = vector.broadcast %cst_27 : f32 to vector<8x16xf32>
      %64 = arith.subf %63, %62 : vector<8x16xf32>
      %cst_28 = arith.constant 0.000000e+00 : f32
      %65 = vector.broadcast %cst_28 : f32 to vector<8x16xf32>
      %66 = arith.maximumf %64, %65 : vector<8x16xf32>
      %67 = arith.mulf %47, %66 : vector<8x16xf32>
      %68 = arith.mulf %49, %66 : vector<8x16xf32>
      %c0_29 = arith.constant 0 : index
      %c0_30 = arith.constant 0 : index
      %69 = vector.load %arg6[%c0_29, %c0_30] : memref<8x16xf32, #tpu.memory_space<vmem>>, vector<8x16xf32>
      tpu.vector_store %arg6[%c0_29, %c0_30], %67 {strides = array<i32>} : memref<8x16xf32, #tpu.memory_space<vmem>>, vector<8x16xf32>,
      %c0_31 = arith.constant 0 : index
      %c0_32 = arith.constant 0 : index
      %70 = vector.load %arg7[%c0_31, %c0_32] : memref<8x16xf32, #tpu.memory_space<vmem>>, vector<8x16xf32>
      tpu.vector_store %arg7[%c0_31, %c0_32], %68 {strides = array<i32>} : memref<8x16xf32, #tpu.memory_space<vmem>>, vector<8x16xf32>,
    } else {
    }
    return
  }
  func.func @transform_0(%arg0: i32, %arg1: i32) -> (i32, i32) {
    %c0_i32 = arith.constant 0 : i32
    %c0_i32_0 = arith.constant 0 : i32
    return %arg0, %c0_i32 : i32, i32
  }
  func.func @transform_1(%arg0: i32, %arg1: i32) -> (i32, i32) {
    %c0_i32 = arith.constant 0 : i32
    %c0_i32_0 = arith.constant 0 : i32
    return %arg0, %c0_i32 : i32, i32
  }
  func.func @transform_2(%arg0: i32, %arg1: i32) -> (i32, i32, i32) {
    %c0_i32 = arith.constant 0 : i32
    %c0_i32_0 = arith.constant 0 : i32
    %c0_i32_1 = arith.constant 0 : i32
    return %arg1, %c0_i32, %c0_i32_0 : i32, i32, i32
  }
  func.func @transform_3(%arg0: i32, %arg1: i32) -> (i32, i32, i32) {
    %c0_i32 = arith.constant 0 : i32
    %c0_i32_0 = arith.constant 0 : i32
    %c0_i32_1 = arith.constant 0 : i32
    %c0_i32_2 = arith.constant 0 : i32
    return %c0_i32, %c0_i32_0, %c0_i32_1 : i32, i32, i32
  }
  func.func @transform_4(%arg0: i32, %arg1: i32) -> (i32, i32) {
    %c0_i32 = arith.constant 0 : i32
    %c0_i32_0 = arith.constant 0 : i32
    return %arg0, %c0_i32 : i32, i32
  }
  func.func @transform_5(%arg0: i32, %arg1: i32) -> (i32, i32) {
    %c0_i32 = arith.constant 0 : i32
    %c0_i32_0 = arith.constant 0 : i32
    return %arg0, %c0_i32 : i32, i32
  }
}

</mosaic_0001>

<llo_original>
// kernel: tpu_custom_call.1
$region0: #{tpu_custom_call.1}
  #allocation0 [shape = 'u32[]', space=smem, size = 0x4, offset = 0x4, fixed_abs, tag = 'smem constant byte address 0x4 - core index']
  #allocation1 [shape = 'u32[72,128]{1,0:T(1,128)}', space=vmem, size = 0x9000, scoped, tag = 'internal scratch']
  #allocation2 [shape = 'f32[8,16]{1,0:T(8,128)}', space=vmem, size = 0x1000, scoped, tag = 'scratch operand']
  #allocation3 [shape = 'f32[8,16]{1,0:T(8,128)}', space=vmem, size = 0x1000, scoped, tag = 'scratch operand']
  %s0 = inlined_call_operand.hbm [shape: f32[8,16], index: 0, kind: input, shape index: {}]
  %s1 = inlined_call_operand.hbm [shape: f32[8,16], index: 1, kind: input, shape index: {}]
  %s2 = inlined_call_operand.hbm [shape: f32[5,16,32], index: 2, kind: input, shape index: {}]
  %s3 = inlined_call_operand.vmem [shape: f32[5,1,1], index: 3, kind: input, shape index: {}]
  %s4 = inlined_call_operand.hbm [shape: f32[8,16], index: 4, kind: output, shape index: {0}]
  %s5 = inlined_call_operand.hbm [shape: f32[8,16], index: 5, kind: output, shape index: {1}]
  %6 = xla_tuple %s4, %s5
  %s7 = sld [smem:[#allocation0]]
  $region77: #{tpu_custom_call.1} parent=0
    _
  %s9 = ssub.s32 1, %s7
  %s10 = scalar_select 0, %s9, %s7
  $region1: #{tpu_custom_call.1} parent=0
    #allocation4 [shape = 'u8[4096]{0}', space=vmem, size = 0x1000, scoped, tag = 'input window, operand 0, single buffered']
    #allocation5 [shape = 's32[2]{0}', space=sflag, size = 0x8, scoped, tag = 'scoped memory for tpu_custom_call.1']
    #allocation6 [shape = 's32[2]{0}', space=sflag, size = 0x8, scoped, tag = 'scoped memory for tpu_custom_call.1']
    #allocation7 [shape = 'u8[4096]{0}', space=vmem, size = 0x1000, scoped, tag = 'input window, operand 1, single buffered']
    #allocation8 [shape = 's32[1]{0}', space=sflag, size = 0x4, scoped, tag = 'scoped memory for tpu_custom_call.1']
    #allocation9 [shape = 'u8[16384]{0}', space=vmem, size = 0x4000, scoped, tag = 'input window, operand 2']
    #allocation10 [shape = 'u8[4096]{0}', space=vmem, size = 0x1000, scoped, tag = 'output window, operand 0, single buffered']
    #allocation11 [shape = 'u8[4096]{0}', space=vmem, size = 0x1000, scoped, tag = 'output window, operand 1, single buffered']
    #allocation12 [shape = 's32[1]{0}', space=sflag, size = 0x4, scoped, tag = 'scoped memory for tpu_custom_call.1']
    %11 = vsyncpa [#allocation5], 0
    %12 = vsyncpa [#allocation8], 0
    %13 = vsyncpa [#allocation6], 0
    %14 = vsyncpa [#allocation12], 0
    loop: start=0, step=1, limit=7
    $region2: #{tpu_custom_call.1} parent=1 // loop_pre_header
      _
    $region3: #{tpu_custom_call.1} parent=1 // loop_header
      %s16 = sphi 0, %s20
      %p17 = scmp.ge.s32.totalorder %s16, 7
      %s23 = sphi 0, %s35
      %s24 = sphi 0, %s31
      %s25 = sphi 0, %s23
      %s26 = sphi 0, %s24
      %s27 = sphi 0, %s25
      %s28 = sphi 0, %s26
      %s38 = sphi 0, %s40
      %s41 = sphi 0, %s38
      %s42 = sphi 0, %s41
      %s58 = sphi 0, %s42
      %s64 = sphi 0, %s66
      %s67 = sphi 0, %s64
      %s68 = sphi 0, %s67
      %s84 = sphi 0, %s68
      %s90 = sphi 0, %s92
      %s93 = sphi 0, %s90
      %s94 = sphi 0, %s93
      %s110 = sphi 0, %s94
      %s114 = sphi 0, %s114
      %s116 = sphi 0, %s114
      %s117 = sphi 0, %s116
      %s131 = sphi 0, %s117
      %s137 = sphi 0, %s139
      %s140 = sphi 0, %s137
      %s141 = sphi 0, %s140
      %s157 = sphi 0, %s141
      %s163 = sphi 0, %s165
      %s166 = sphi 0, %s163
      %s167 = sphi 0, %s166
      %s183 = sphi 0, %s167
    $region4: #{tpu_custom_call.1} parent=1 // loop_header_branch
      %19 = sbr.rel (%p17) target = $region8
    $region5: #{tpu_custom_call.1} parent=1 // loop_body
      %s21 = ssub.s32 %s16, 1
      %s22 = ssub.s32 %s16, 2
      %s29 = sadd.s32 1, %s24
      %p30 = scmp.ge.s32.totalorder %s29, 5
      %s31 = scalar_select %p30, 0, %s29
      %s32 = sadd.s32 1, %s23
      %s33 = scalar_select %p30, %s32, %s23
      %p34 = scmp.ge.s32.totalorder %s33, 1
      %s35 = scalar_select %p34, 0, %s33
      %s36 = ssub.s32 %s23, %s35
      %p37 = scmp.eq.s32.totalorder %s36, 0
      %s39 = sadd.s32 %s38, 1
      %s40 = scalar_select %p37, %s38, %s39
      %p43 = pneg %p37
      %p44 = scmp.eq.s32.totalorder %s16, 4
      %p45 = por %p43, %p44
      %p46 = scmp.ne.s32.totalorder %s38, %s41
      %p47 = scmp.eq.s32.totalorder %s16, 0
      %p48 = por %p46, %p47
      %p49 = scmp.ne.s32.totalorder %s38, %s41
      %p50 = scmp.eq.s32.totalorder %s21, 4
      %p51 = por %p49, %p50
      %p52 = scmp.ne.s32.totalorder %s41, %s42
      %p53 = scmp.eq.s32.totalorder %s21, 0
      %p54 = por %p52, %p53
      %p55 = scmp.ne.s32.totalorder %s41, %s42
      %p56 = scmp.eq.s32.totalorder %s22, 4
      %p57 = por %p55, %p56
      %p59 = scmp.ne.s32.totalorder %s42, %s58
      %p60 = scmp.eq.s32.totalorder %s22, 0
      %p61 = por %p59, %p60
      %s62 = ssub.s32 %s23, %s35
      %p63 = scmp.eq.s32.totalorder %s62, 0
      %s65 = sadd.s32 %s64, 1
      %s66 = scalar_select %p63, %s64, %s65
      %p69 = pneg %p63
      %p70 = scmp.eq.s32.totalorder %s16, 4
      %p71 = por %p69, %p70
      %p72 = scmp.ne.s32.totalorder %s64, %s67
      %p73 = scmp.eq.s32.totalorder %s16, 0
      %p74 = por %p72, %p73
      %p75 = scmp.ne.s32.totalorder %s64, %s67
      %p76 = scmp.eq.s32.totalorder %s21, 4
      %p77 = por %p75, %p76
      %p78 = scmp.ne.s32.totalorder %s67, %s68
      %p79 = scmp.eq.s32.totalorder %s21, 0
      %p80 = por %p78, %p79
      %p81 = scmp.ne.s32.totalorder %s67, %s68
      %p82 = scmp.eq.s32.totalorder %s22, 4
      %p83 = por %p81, %p82
      %p85 = scmp.ne.s32.totalorder %s68, %s84
      %p86 = scmp.eq.s32.totalorder %s22, 0
      %p87 = por %p85, %p86
      %s88 = ssub.s32 %s24, %s31
      %p89 = scmp.eq.s32.totalorder %s88, 0
      %s91 = sadd.s32 %s90, 1
      %s92 = scalar_select %p89, %s90, %s91
      %p95 = pneg %p89
      %p96 = scmp.eq.s32.totalorder %s16, 4
      %p97 = por %p95, %p96
      %p98 = scmp.ne.s32.totalorder %s90, %s93
      %p99 = scmp.eq.s32.totalorder %s16, 0
      %p100 = por %p98, %p99
      %p101 = scmp.ne.s32.totalorder %s90, %s93
      %p102 = scmp.eq.s32.totalorder %s21, 4
      %p103 = por %p101, %p102
      %p104 = scmp.ne.s32.totalorder %s93, %s94
      %p105 = scmp.eq.s32.totalorder %s21, 0
      %p106 = por %p104, %p105
      %p107 = scmp.ne.s32.totalorder %s93, %s94
      %p108 = scmp.eq.s32.totalorder %s22, 4
      %p109 = por %p107, %p108
      %p111 = scmp.ne.s32.totalorder %s94, %s110
      %p112 = scmp.eq.s32.totalorder %s22, 0
      %p113 = por %p111, %p112
      %s115 = sadd.s32 %s114, 1
      %p118 = scmp.eq.s32.totalorder %s16, 4
      %p119 = scmp.ne.s32.totalorder %s114, %s116
      %p120 = scmp.eq.s32.totalorder %s16, 0
      %p121 = por %p119, %p120
      %p122 = scmp.ne.s32.totalorder %s114, %s116
      %p123 = scmp.eq.s32.totalorder %s21, 4
      %p124 = por %p122, %p123
      %p125 = scmp.ne.s32.totalorder %s116, %s117
      %p126 = scmp.eq.s32.totalorder %s21, 0
      %p127 = por %p125, %p126
      %p128 = scmp.ne.s32.totalorder %s116, %s117
      %p129 = scmp.eq.s32.totalorder %s22, 4
      %p130 = por %p128, %p129
      %p132 = scmp.ne.s32.totalorder %s117, %s131
      %p133 = scmp.eq.s32.totalorder %s22, 0
      %p134 = por %p132, %p133
      %s135 = ssub.s32 %s23, %s35
      %p136 = scmp.eq.s32.totalorder %s135, 0
      %s138 = sadd.s32 %s137, 1
      %s139 = scalar_select %p136, %s137, %s138
      %p142 = pneg %p136
      %p143 = scmp.eq.s32.totalorder %s16, 4
      %p144 = por %p142, %p143
      %p145 = scmp.ne.s32.totalorder %s137, %s140
      %p146 = scmp.eq.s32.totalorder %s16, 0
      %p147 = por %p145, %p146
      %p148 = scmp.ne.s32.totalorder %s137, %s140
      %p149 = scmp.eq.s32.totalorder %s21, 4
      %p150 = por %p148, %p149
      %p151 = scmp.ne.s32.totalorder %s140, %s141
      %p152 = scmp.eq.s32.totalorder %s21, 0
      %p153 = por %p151, %p152
      %p154 = scmp.ne.s32.totalorder %s140, %s141
      %p155 = scmp.eq.s32.totalorder %s22, 4
      %p156 = por %p154, %p155
      %p158 = scmp.ne.s32.totalorder %s141, %s157
      %p159 = scmp.eq.s32.totalorder %s22, 0
      %p160 = por %p158, %p159
      %s161 = ssub.s32 %s23, %s35
      %p162 = scmp.eq.s32.totalorder %s161, 0
      %s164 = sadd.s32 %s163, 1
      %s165 = scalar_select %p162, %s163, %s164
      %p168 = pneg %p162
      %p169 = scmp.eq.s32.totalorder %s16, 4
      %p170 = por %p168, %p169
      %p171 = scmp.ne.s32.totalorder %s163, %s166
      %p172 = scmp.eq.s32.totalorder %s16, 0
      %p173 = por %p171, %p172
      %p174 = scmp.ne.s32.totalorder %s163, %s166
      %p175 = scmp.eq.s32.totalorder %s21, 4
      %p176 = por %p174, %p175
      %p177 = scmp.ne.s32.totalorder %s166, %s167
      %p178 = scmp.eq.s32.totalorder %s21, 0
      %p179 = por %p177, %p178
      %p180 = scmp.ne.s32.totalorder %s166, %s167
      %p181 = scmp.eq.s32.totalorder %s22, 4
      %p182 = por %p180, %p181
      %p184 = scmp.ne.s32.totalorder %s167, %s183
      %p185 = scmp.eq.s32.totalorder %s22, 0
      %p186 = por %p184, %p185
      %p187 = scmp.le.s32.totalorder 1, %s16
      %p188 = scmp.lt.s32.totalorder %s16, 6
      %p189 = pnand %p187, %p188
      %p190 = pneg %p189
      // Predicated region
      $region9: #{tpu_custom_call.1} parent=5 // pred_check
        _
      $region10: #{tpu_custom_call.1} parent=5 // pred_check_branch
        %192 = sbr.rel (%p189) target = $region12
      $region11: #{tpu_custom_call.1} parent=5 // pred_region
        %s193 = ssub.s32 %s16, 1
        // Predicated region
        $region13: #{tpu_custom_call.1} parent=11 // pred_check
          %p194 = pneg %p54
        $region14: #{tpu_custom_call.1} parent=11 // pred_check_branch
          %196 = sbr.rel (%p194) target = $region16
        $region15: #{tpu_custom_call.1} parent=11 // pred_region
          %198 = vsyncadd [#allocation5], 0
          %s199 = smul.addr %s25, 8
          %s200 = scalar_lea.hbm %s0, %s199
          %s202 = sshll.u32 %s200, 4
          %s203 = int_to_ptr.hbm [resolvable:$true] %s202
          %s204 = sshll.u32 [#allocation4], 4
          %s205 = int_to_ptr.vmem [resolvable:$true] %s204
          %207 = dma.hbm_to_vmem [thread:$0]  %s203, 128, %s205, [#allocation5]
        $region16: #{tpu_custom_call.1} parent=11 // pred_fallthru
          _
        // Predicated region
        $region17: #{tpu_custom_call.1} parent=11 // pred_check
          %p208 = pneg %p80
        $region18: #{tpu_custom_call.1} parent=11 // pred_check_branch
          %210 = sbr.rel (%p208) target = $region20
        $region19: #{tpu_custom_call.1} parent=11 // pred_region
          %212 = vsyncadd [#allocation8], 0
          %s213 = smul.addr %s25, 8
          %s214 = scalar_lea.hbm %s1, %s213
          %s216 = sshll.u32 %s214, 4
          %s217 = int_to_ptr.hbm [resolvable:$true] %s216
          %s218 = sshll.u32 [#allocation7], 4
          %s219 = int_to_ptr.vmem [resolvable:$true] %s218
          %221 = dma.hbm_to_vmem [thread:$0]  %s217, 128, %s219, [#allocation8]
        $region20: #{tpu_custom_call.1} parent=11 // pred_fallthru
          _
        // Predicated region
        $region21: #{tpu_custom_call.1} parent=11 // pred_check
          %p222 = pneg %p127
        $region22: #{tpu_custom_call.1} parent=11 // pred_check_branch
          %224 = sbr.rel (%p222) target = $region24
        $region23: #{tpu_custom_call.1} parent=11 // pred_region
          _
        $region24: #{tpu_custom_call.1} parent=11 // pred_fallthru
          _
      $region12: #{tpu_custom_call.1} parent=5 // pred_fallthru
        _
      %p225 = scmp.lt.s32.totalorder %s16, 5
      // Predicated region
      $region25: #{tpu_custom_call.1} parent=5 // pred_check
        %p226 = pneg %p225
      $region26: #{tpu_custom_call.1} parent=5 // pred_check_branch
        %228 = sbr.rel (%p226) target = $region28
      $region27: #{tpu_custom_call.1} parent=5 // pred_region
        // Predicated region
        $region29: #{tpu_custom_call.1} parent=27 // pred_check
          %p229 = pneg %p100
        $region30: #{tpu_custom_call.1} parent=27 // pred_check_branch
          %231 = sbr.rel (%p229) target = $region32
        $region31: #{tpu_custom_call.1} parent=27 // pred_region
          %s232 = sand.u32 %s16, 1
          %s233 = scalar_lea.sflag [#allocation5], %s232
          %s234 = sand.u32 %s90, 1
          %s235 = smul.addr %s234, 16
          %s236 = scalar_lea.vmem [#allocation9], %s235
          %238 = vsyncadd %s233, 0
          %s239 = smul.addr %s24, 2
          %s240 = smul.addr %s239, 8
          %s241 = scalar_lea.hbm %s2, %s240
          %s242 = sshll.u32 %s241, 4
          %s243 = int_to_ptr.hbm [resolvable:$true] %s242
          %s244 = sshll.u32 %s236, 4
          %s245 = int_to_ptr.vmem [resolvable:$true] %s244
          %250 = dma.hbm_to_vmem [thread:$0]  %s243, 256, %s245, %s233, 128, 128, 8
        $region32: #{tpu_custom_call.1} parent=27 // pred_fallthru
          _
      $region28: #{tpu_custom_call.1} parent=5 // pred_fallthru
        _
      %p251 = scmp.le.s32.totalorder 1, %s16
      %p252 = scmp.lt.s32.totalorder %s16, 6
      %p253 = pnand %p251, %p252
      %p254 = pneg %p253
      // Predicated region
      $region33: #{tpu_custom_call.1} parent=5 // pred_check
        _
      $region34: #{tpu_custom_call.1} parent=5 // pred_check_branch
        %256 = sbr.rel (%p253) target = $region36
      $region35: #{tpu_custom_call.1} parent=5 // pred_region
        %s257 = ssub.s32 %s16, 1
        // Predicated region
        $region37: #{tpu_custom_call.1} parent=35 // pred_check
          %p258 = pneg %p54
        $region38: #{tpu_custom_call.1} parent=35 // pred_check_branch
          %260 = sbr.rel (%p258) target = $region40
        $region39: #{tpu_custom_call.1} parent=35 // pred_region
          %262 = dma.done [#allocation5], 128
        $region40: #{tpu_custom_call.1} parent=35 // pred_fallthru
          _
        // Predicated region
        $region41: #{tpu_custom_call.1} parent=35 // pred_check
          %p263 = pneg %p80
        $region42: #{tpu_custom_call.1} parent=35 // pred_check_branch
          %265 = sbr.rel (%p263) target = $region44
        $region43: #{tpu_custom_call.1} parent=35 // pred_region
          %267 = dma.done [#allocation8], 128
        $region44: #{tpu_custom_call.1} parent=35 // pred_fallthru
          _
        %s268 = sand.u32 %s21, 1
        %s269 = scalar_lea.sflag [#allocation5], %s268
        %s270 = sand.u32 %s93, 1
        %s271 = smul.addr %s270, 16
        %s272 = scalar_lea.vmem [#allocation9], %s271
        // Predicated region
        $region45: #{tpu_custom_call.1} parent=35 // pred_check
          %p273 = pneg %p106
        $region46: #{tpu_custom_call.1} parent=35 // pred_check_branch
          %275 = sbr.rel (%p273) target = $region48
        $region47: #{tpu_custom_call.1} parent=35 // pred_region
          %277 = dma.done %s269, 256
        $region48: #{tpu_custom_call.1} parent=35 // pred_fallthru
          _
        %p278 = pneg %p54
        %p279 = pneg %p51
        %p280 = pneg %p80
        %p281 = pneg %p77
        %s282 = sand.u32 %s21, 1
        %s283 = scalar_lea.sflag [#allocation5], %s282
        %s284 = sand.u32 %s93, 1
        %s285 = smul.addr %s284, 16
        %s286 = scalar_lea.vmem [#allocation9], %s285
        %p287 = pneg %p106
        %p288 = pneg %p103
        %p289 = pneg %p127
        %p290 = pneg %p124
        %p291 = pneg %p153
        %p292 = pneg %p150
        %p293 = pneg %p179
        %p294 = pneg %p176
        %p295 = scmp.eq.s32.totalorder %s26, 0
        // Predicated region
        $region49: #{tpu_custom_call.1} parent=35 // pred_check
          %p296 = pneg %p295
        $region50: #{tpu_custom_call.1} parent=35 // pred_check_branch
          %298 = sbr.rel (%p296) target = $region52
        $region51: #{tpu_custom_call.1} parent=35 // pred_region
          %vm299 = vcmask 130048
          %300 = vst.msk [vmem:[#allocation2] sm:$0xff] %vm299, 0.0
          %301 = vst.msk [vmem:[#allocation3] sm:$0xff] %vm299, 0.0
        $region52: #{tpu_custom_call.1} parent=35 // pred_fallthru
          _
        %v302 = vld [vmem:[#allocation2] sm:$0xff]
        %v303 = vld [vmem:[#allocation3] sm:$0xff]
        %v304 = vmul.f32 %v302, %v302
        %v305 = vmul.f32 %v303, %v303
        %v306 = vadd.f32 %v304, %v305
        %v307 = vmax.f32 %v306, 1e-30
        %v308 = vrsqrt.pop %v307
        %v309 = vmul.f32 %v308, %v307
        %v310 = vmul.f32 %v309, %v308
        %v311 = vmul.f32 0.5, %v310
        %v312 = vsub.f32 1.5, %v311
        %v313 = vmul.f32 %v308, %v312
        %vm314 = vweird.f32 %v307
        %vm315 = vweird.f32 %v308
        %vm316 = vmor %vm314, %vm315
        %v317 = vsel %vm316, %v308, %v313
        %v318 = vmul.f32 %v317, 0.1
        %v319 = vsub.f32 1.0, %v318
        %v320 = vmax.f32 %v319, 0.0
        %v321 = vmul.f32 %v302, %v320
        %v322 = vmul.f32 %v303, %v320
        %s323 = scalar_lea.vmem %s3, %s26
        %v324 = vld [vmem:[%s323] sm:$0x1]
        %v325 = vmul.f32 %v321, 2.0
        %v326 = vsub.f32 %v325, %v302
        %v328 = vperm.slane %v324, 0
        %329 = vset.pattern.permute.xlu0 0
        %330 = vperm.xlu0 %329, %v328
        %v331 = vpop.permute.xlu0 %330
        %v333 = vmul.f32 %v331, %v326
        %v334 = vld [vmem:[#allocation4] sm:$0xff]
        %v335 = vadd.f32 %v333, %v334
        %v336 = vmul.f32 %v322, 2.0
        %v337 = vsub.f32 %v336, %v303
        %v338 = vmul.f32 %v331, %v337
        %v339 = vld [vmem:[#allocation7] sm:$0xff]
        %v340 = vadd.f32 %v338, %v339
        %v341 = vld [vmem:[%s272] sm:$0xff]
        %v342 = vld [vmem:[%s272 + $0x8] sm:$0xff]
        %vm343 = vcmask 130048
        %v345 = vsel %vm343, %v335, 0
        %347 = vmatpush.msra.mxu0 0.0
        %348 = vmatpush.msra.mxu0 0.0
        %349 = vmatpush.msra.mxu0 0.0
        %350 = vmatpush.msra.mxu0 0.0
        %351 = vmatpush.msra.mxu0 0.0
        %352 = vmatpush.msra.mxu0 0.0
        %353 = vmatpush.msra.mxu0 0.0
        %354 = vmatpush.msra.mxu0 0.0
        %355 = vmatpush.msra.mxu0 0.0
        %356 = vmatpush.msra.mxu0 0.0
        %357 = vmatpush.msra.mxu0 0.0
        %358 = vmatpush.msra.mxu0 0.0
        %359 = vmatpush.msra.mxu0 0.0
        %360 = vmatpush.msra.mxu0 0.0
        %361 = vmatpush.msra.mxu0 %v342
        %362 = vmatpush.msra.mxu0 %v341
        %363 = vmatmul.f32.gmra.mxu0 %v345
        %v364 = vpop.f32.mrf.mxu0
        %v365 = vadd.f32 0.0, %v364
        %366 = vdwg.mxu0
        %v368 = vsel %vm343, %v340, 0
        %370 = vmatpush.msra.mxu0 0.0
        %371 = vmatpush.msra.mxu0 0.0
        %372 = vmatpush.msra.mxu0 0.0
        %373 = vmatpush.msra.mxu0 0.0
        %374 = vmatpush.msra.mxu0 0.0
        %375 = vmatpush.msra.mxu0 0.0
        %376 = vmatpush.msra.mxu0 0.0
        %377 = vmatpush.msra.mxu0 0.0
        %378 = vmatpush.msra.mxu0 0.0
        %379 = vmatpush.msra.mxu0 0.0
        %380 = vmatpush.msra.mxu0 0.0
        %381 = vmatpush.msra.mxu0 0.0
        %382 = vmatpush.msra.mxu0 0.0
        %383 = vmatpush.msra.mxu0 0.0
        %384 = vmatpush.msra.mxu0 %v342
        %385 = vmatpush.msra.mxu0 %v341
        %386 = vmatmul.f32.gmra.mxu0 %v368
        %v387 = vpop.f32.mrf.mxu0
        %v388 = vadd.f32 0.0, %v387
        %389 = vdwg.mxu0
        %391 = vrot.lane.b32.xlu0 %v388, 112
        %v392 = vpop.permute.xlu0 %391
        %v394 = vsub.f32 %v365, %v392
        %395 = vrot.lane.b32.xlu0 %v388, 16
        %v396 = vpop.permute.xlu0 %395
        %v398 = vadd.f32 %v365, %v396
        %v399 = vadd.f32 %v394, %v302
        %v400 = vsub.f32 %v399, %v321
        %402 = vrot.lane.b32.xlu0 %v303, 16
        %v403 = vpop.permute.xlu0 %402
        %v405 = vadd.f32 %v398, %v403
        %407 = vrot.lane.b32.xlu0 %v322, 16
        %v408 = vpop.permute.xlu0 %407
        %v410 = vsub.f32 %v405, %v408
        %411 = vst.msk [vmem:[#allocation2] sm:$0xff] %vm343, %v400
        %413 = vrot.lane.b32.xlu0 %v410, 112
        %v414 = vpop.permute.xlu0 %413
        %416 = vst.msk [vmem:[#allocation3] sm:$0xff] %vm343, %v414
        %p417 = scmp.eq.s32.totalorder %s26, 4
        // Predicated region
        $region53: #{tpu_custom_call.1} parent=35 // pred_check
          %p418 = pneg %p417
        $region54: #{tpu_custom_call.1} parent=35 // pred_check_branch
          %420 = sbr.rel (%p418) target = $region56
        $region55: #{tpu_custom_call.1} parent=35 // pred_region
          %v421 = vmul.f32 %v400, %v400
          %v422 = vmul.f32 %v410, %v410
          %424 = vrot.lane.b32.xlu0 %v422, 112
          %v425 = vpop.permute.xlu0 %424
          %v427 = vadd.f32 %v421, %v425
          %v428 = vmax.f32 %v427, 1e-30
          %v429 = vrsqrt.pop %v428
          %v430 = vmul.f32 %v429, %v428
          %v431 = vmul.f32 %v430, %v429
          %v432 = vmul.f32 0.5, %v431
          %v433 = vsub.f32 1.5, %v432
          %v434 = vmul.f32 %v429, %v433
          %vm435 = vweird.f32 %v428
          %vm436 = vweird.f32 %v429
          %vm437 = vmor %vm435, %vm436
          %v438 = vsel %vm437, %v429, %v434
          %v439 = vmul.f32 %v438, 0.1
          %v440 = vsub.f32 1.0, %v439
          %v441 = vmax.f32 %v440, 0.0
          %v442 = vmul.f32 %v400, %v441
          %444 = vrot.lane.b32.xlu0 %v441, 16
          %v445 = vpop.permute.xlu0 %444
          %v447 = vmul.f32 %v410, %v445
          %448 = vst.msk [vmem:[#allocation10] sm:$0xff] %vm343, %v442
          %450 = vrot.lane.b32.xlu0 %v447, 112
          %v451 = vpop.permute.xlu0 %450
          %453 = vst.msk [vmem:[#allocation11] sm:$0xff] %vm343, %v451
        $region56: #{tpu_custom_call.1} parent=35 // pred_fallthru
          _
        // Predicated region
        $region57: #{tpu_custom_call.1} parent=35 // pred_check
          %p454 = pneg %p150
        $region58: #{tpu_custom_call.1} parent=35 // pred_check_branch
          %456 = sbr.rel (%p454) target = $region60
        $region59: #{tpu_custom_call.1} parent=35 // pred_region
          %458 = vsyncadd [#allocation6], 0
          %s459 = smul.addr %s25, 8
          %s460 = scalar_lea.hbm %s4, %s459
          %s462 = sshll.u32 [#allocation10], 4
          %s463 = int_to_ptr.vmem [resolvable:$true] %s462
          %s464 = sshll.u32 %s460, 4
          %s465 = int_to_ptr.hbm [resolvable:$true] %s464
          %467 = dma.vmem_to_hbm [thread:$0]  %s463, 128, %s465, [#allocation6]
        $region60: #{tpu_custom_call.1} parent=35 // pred_fallthru
          _
        // Predicated region
        $region61: #{tpu_custom_call.1} parent=35 // pred_check
          %p468 = pneg %p176
        $region62: #{tpu_custom_call.1} parent=35 // pred_check_branch
          %470 = sbr.rel (%p468) target = $region64
        $region63: #{tpu_custom_call.1} parent=35 // pred_region
          %472 = vsyncadd [#allocation12], 0
          %s473 = smul.addr %s25, 8
          %s474 = scalar_lea.hbm %s5, %s473
          %s476 = sshll.u32 [#allocation11], 4
          %s477 = int_to_ptr.vmem [resolvable:$true] %s476
          %s478 = sshll.u32 %s474, 4
          %s479 = int_to_ptr.hbm [resolvable:$true] %s478
          %481 = dma.vmem_to_hbm [thread:$0]  %s477, 128, %s479, [#allocation12]
        $region64: #{tpu_custom_call.1} parent=35 // pred_fallthru
          _
        // Predicated region
        $region65: #{tpu_custom_call.1} parent=35 // pred_check
          %p482 = pneg %p150
        $region66: #{tpu_custom_call.1} parent=35 // pred_check_branch
          %484 = sbr.rel (%p482) target = $region68
        $region67: #{tpu_custom_call.1} parent=35 // pred_region
          %486 = dma.done [#allocation6], 128
        $region68: #{tpu_custom_call.1} parent=35 // pred_fallthru
          _
        // Predicated region
        $region69: #{tpu_custom_call.1} parent=35 // pred_check
          %p487 = pneg %p176
        $region70: #{tpu_custom_call.1} parent=35 // pred_check_branch
          %489 = sbr.rel (%p487) target = $region72
        $region71: #{tpu_custom_call.1} parent=35 // pred_region
          %491 = dma.done [#allocation12], 128
        $region72: #{tpu_custom_call.1} parent=35 // pred_fallthru
          _
      $region36: #{tpu_custom_call.1} parent=5 // pred_fallthru
        _
      %p492 = scmp.le.s32.totalorder 2, %s16
      // Predicated region
      $region73: #{tpu_custom_call.1} parent=5 // pred_check
        %p493 = pneg %p492
      $region74: #{tpu_custom_call.1} parent=5 // pred_check_branch
        %495 = sbr.rel (%p493) target = $region76
      $region75: #{tpu_custom_call.1} parent=5 // pred_region
        %s496 = ssub.s32 %s16, 2
      $region76: #{tpu_custom_call.1} parent=5 // pred_fallthru
        _
    $region6: #{tpu_custom_call.1} parent=1 // loop_footer
      %s20 = sadd.s32 1, %s16
    $region7: #{tpu_custom_call.1} parent=1 // loop_footer_branch
      %15 = sbr.rel target = $region3
    $region8: #{tpu_custom_call.1} parent=1 // loop_exit
      _
    %497 = vsyncpa [#allocation5], 1
    %s498 = scalar_lea.sflag [#allocation5], 1
    %499 = vsyncpa %s498, 1
    %500 = vsyncpa [#allocation8], 1
    %501 = vsyncpa [#allocation6], 1
    %s502 = scalar_lea.sflag [#allocation6], 1
    %503 = vsyncpa %s502, 1
    %504 = vsyncpa [#allocation12], 1

</llo_original>
